<compile_context>
chip_gen: v7x
topology: tpu7x:2x2x1
jax: 0.10.0
libtpu: 0.0.40
codegen_flags: <defaults>
</compile_context>

<pallas_src>
import functools
import math

import jax
import jax.numpy as jnp
import numpy as np
from jax import lax
from jax.experimental import pallas as pl
from jax.experimental.pallas import tpu as pltpu

# eps used by nn.RMSNorm when eps=None for float32 inputs: torch.finfo(float32).eps
_RMS_EPS = 1.1920929e-07
_INV_SQRT2 = 0.7071067811865476
_SQRT_2_OVER_PI = 0.7978845608028654


def _adapter_kernel(x_ref, w1_ref, b1_ref, w2_ref, b2_ref, o_ref, *, approximate_gelu):
    x = x_ref[...].astype(jnp.float32)

    # --- RMSNorm(input_size, elementwise_affine=False), f32 math ---
    x = x * lax.rsqrt(jnp.mean(x * x, axis=-1, keepdims=True) + _RMS_EPS)

    # --- Dropout(0.3): identity in eval mode ---
    # TODO(synk): training-mode dropout (stochastic masking) not implemented; eval semantics only.

    # --- Linear(input_size -> hidden_size): f32 operands, f32 accumulation on the MXU ---
    h = jnp.dot(x, w1_ref[...], preferred_element_type=jnp.float32) + b1_ref[...]

    # --- RMSNorm(hidden_size, elementwise_affine=False) ---
    h = h * lax.rsqrt(jnp.mean(h * h, axis=-1, keepdims=True) + _RMS_EPS)

    # --- GELU, with its 0.5 factor pre-folded into W2 by the wrapper ---
    if approximate_gelu:
        # tanh-approx GELU: transcendental runs on the (idle) EUP slot instead of a
        # VALU erf polynomial.  Opt-in (changes numerics vs nn.GELU() exact).
        g = h * (1.0 + jnp.tanh(_SQRT_2_OVER_PI * (h + 0.044715 * (h * h * h))))
    else:
        # exact erf GELU (matches nn.GELU() default)
        g = h * (1.0 + lax.erf(h * _INV_SQRT2))

    # --- Dropout(0.3): identity in eval mode ---

    # --- Linear(hidden_size -> output_size); W2 already scaled by 0.5, bias untouched ---
    y = jnp.dot(g, w2_ref[...], preferred_element_type=jnp.float32) + b2_ref[...]
    o_ref[...] = y.astype(o_ref.dtype)


def _round_up(x, m):
    return (x + m - 1) // m * m


def _cores_per_device():
    """Best-effort TensorCore-per-device count (megacore / v7x).  Defaults to 1."""
    try:
        dev = jax.devices()[0]
        n = getattr(dev, "num_cores", None)
        if isinstance(n, int) and 1 <= n <= 8:
            return n
        kind = str(getattr(dev, "device_kind", "")).lower()
        if any(tag in kind for tag in ("v4", "v5p", "7x", "v7")):
            return 2
    except Exception:
        pass
    return 1


def _choose_block_b(batch, n_cores, target=2048):
    """Largest-tile-first batch tiling:
       * multiples of 8 (sublane), never exceeding the batch (no wrapper padding),
       * single-TC parts (v5e/v6e): fewest, biggest tiles,
       * multi-TC parts: even number of grid steps once the batch is big enough,
       * ragged tail left to Pallas edge-block clipping."""
    if batch <= 8:
        return max(batch, 1)                       # one block == the full (ragged) batch dim
    b8 = _round_up(batch, 8)
    num_tiles = pl.cdiv(b8, target)
    if n_cores > 1 and b8 >= 128 * n_cores:
        num_tiles = _round_up(num_tiles, n_cores)  # even grid -> both TCs busy on v7x
    block_b = min(_round_up(pl.cdiv(batch, num_tiles), 8), (batch // 8) * 8)
    return max(block_b, 8)


@functools.partial(jax.jit, static_argnames=("block_b", "approximate_gelu"))
def adapter_forward(x, w1, b1, w2, b2, *, block_b=None, approximate_gelu=False):
    """x: [B, input_size]; w1: [input_size, hidden]; b1: [1, hidden];
    w2: [hidden, output_size]; b2: [1, output_size]  ->  [B, output_size].

    Weights are pre-transposed vs. PyTorch (y = x @ W + b)."""
    B, input_size = x.shape
    hidden_size = w1.shape[1]
    output_size = w2.shape[1]

    if block_b is None:
        block_b = _choose_block_b(B, _cores_per_device())

    grid = (pl.cdiv(B, block_b),)

    # Fold the GELU's 0.5 into W2 (scales a ~2 KB constant, not the streamed input;
    # ideally hoisted to one-time parameter setup).  Bias b2 is NOT scaled.
    w2 = w2 * jnp.float32(0.5)

    # VMEM budget: double-buffered x/out tiles + resident weights + hidden intermediate + headroom.
    item = 4  # f32
    io_tile = block_b * (input_size + output_size) * item
    hid_tile = block_b * hidden_size * item
    weight_bytes = (input_size * hidden_size + hidden_size + hidden_size * output_size + output_size) * item
    vmem_limit = int(min(max(2 * io_tile + 2 * hid_tile + 2 * weight_bytes + (4 << 20), 16 << 20), 32 << 20))

    kernel = functools.partial(_adapter_kernel, approximate_gelu=approximate_gelu)

    return pl.pallas_call(
        kernel,
        out_shape=jax.ShapeDtypeStruct((B, output_size), x.dtype),
        grid_spec=pltpu.PrefetchScalarGridSpec(
            num_scalar_prefetch=0,
            grid=grid,
            in_specs=[
                pl.BlockSpec((block_b, input_size), lambda i: (i, 0)),       # x tile (ragged tail OK)
                pl.BlockSpec((input_size, hidden_size), lambda i: (0, 0)),   # W1 (resident)
                pl.BlockSpec((1, hidden_size), lambda i: (0, 0)),            # b1
                pl.BlockSpec((hidden_size, output_size), lambda i: (0, 0)),  # W2*0.5 (resident)
                pl.BlockSpec((1, output_size), lambda i: (0, 0)),            # b2
            ],
            out_specs=pl.BlockSpec((block_b, output_size), lambda i: (i, 0)),
        ),
        compiler_params=pltpu.CompilerParams(
            dimension_semantics=("parallel",),
            vmem_limit_bytes=vmem_limit,
        ),
    )(x, w1, b1, w2, b2)


def _reference(x, w1, b1, w2, b2, *, approximate_gelu=False):
    """Pure-JAX reference of the same forward (eval mode), full-f32 matmuls."""
    x = x.astype(jnp.float32)
    x = x * lax.rsqrt(jnp.mean(x * x, axis=-1, keepdims=True) + _RMS_EPS)
    h = jnp.dot(x, w1, preferred_element_type=jnp.float32,
                precision=lax.Precision.HIGHEST) + b1
    h = h * lax.rsqrt(jnp.mean(h * h, axis=-1, keepdims=True) + _RMS_EPS)
    if approximate_gelu:
        g = 0.5 * h * (1.0 + jnp.tanh(_SQRT_2_OVER_PI * (h + 0.044715 * (h * h * h))))
    else:
        g = 0.5 * h * (1.0 + lax.erf(h * _INV_SQRT2))
    return jnp.dot(g, w2, preferred_element_type=jnp.float32,
                   precision=lax.Precision.HIGHEST) + b2


if __name__ == "__main__":
    # Module config: input_size=64, output_size=16 -> hidden_size = int(sqrt(64*16)) = 32
    input_size = 64
    output_size = 16
    hidden_size = int(math.isqrt(input_size * output_size))
    batch = 50  # not a multiple of 8: exercises Pallas ragged-edge handling (no wrapper pad/slice)

    key = jax.random.PRNGKey(0)
    kx, kw1, kb1, kw2, kb2 = jax.random.split(key, 5)

    x = jax.random.normal(kx, (batch, input_size), dtype=jnp.float32)

    # Deterministic parameter init (Kaiming-uniform-ish bounds like nn.Linear defaults).
    bound1 = 1.0 / math.sqrt(input_size)
    w1 = jax.random.uniform(kw1, (input_size, hidden_size), jnp.float32, -bound1, bound1)
    b1 = jax.random.uniform(kb1, (1, hidden_size), jnp.float32, -bound1, bound1)
    bound2 = 1.0 / math.sqrt(hidden_size)
    w2 = jax.random.uniform(kw2, (hidden_size, output_size), jnp.float32, -bound2, bound2)
    b2 = jax.random.uniform(kb2, (1, output_size), jnp.float32, -bound2, bound2)

    # Default path: exact erf GELU (matches nn.GELU()).
    y = adapter_forward(x, w1, b1, w2, b2)
    jax.block_until_ready(y)
    assert y.shape == (batch, output_size)
    y_ref = _reference(x, w1, b1, w2, b2, approximate_gelu=False)
    assert jnp.allclose(y, y_ref, atol=2e-2, rtol=2e-2), "mismatch vs. exact-GELU f32 reference"

    # Opt-in perf path (review feedback): tanh-approx GELU on the EUP slot.
    y_approx = adapter_forward(x, w1, b1, w2, b2, approximate_gelu=True)
    jax.block_until_ready(y_approx)
    y_ref_approx = _reference(x, w1, b1, w2, b2, approximate_gelu=True)
    assert jnp.allclose(y_approx, y_ref_approx, atol=2e-2, rtol=2e-2), \
        "mismatch vs. approx-GELU f32 reference"

    print("KERNEL_OK")
</pallas_src>

<mosaic_0001>
module attributes {stable_mosaic.version = 11 : i64} {
  func.func @_adapter_kernel(%arg0: i32, %arg1: memref<48x64xf32, #tpu.memory_space<vmem>>, %arg2: memref<64x32xf32, #tpu.memory_space<vmem>>, %arg3: memref<1x32xf32, #tpu.memory_space<vmem>>, %arg4: memref<32x16xf32, #tpu.memory_space<vmem>>, %arg5: memref<1x16xf32, #tpu.memory_space<vmem>>, %arg6: memref<48x16xf32, #tpu.memory_space<vmem>>) attributes {dimension_semantics = [#tpu.dimension_semantics<parallel>], iteration_bounds = array<i64: 2>, scalar_prefetch = 0 : i64, scratch_operands = 0 : i64, tpu.core_type = #tpu.core_type<tc>, window_params = [{transform_indices = @transform_0, window_bounds = array<i64: 48, 64>}, {pipeline_mode = #tpu.pipeline_mode<synchronous>, transform_indices = @transform_1, window_bounds = array<i64: 64, 32>}, {pipeline_mode = #tpu.pipeline_mode<synchronous>, transform_indices = @transform_2, window_bounds = array<i64: 1, 32>}, {pipeline_mode = #tpu.pipeline_mode<synchronous>, transform_indices = @transform_3, window_bounds = array<i64: 32, 16>}, {pipeline_mode = #tpu.pipeline_mode<synchronous>, transform_indices = @transform_4, window_bounds = array<i64: 1, 16>}, {transform_indices = @transform_5, window_bounds = array<i64: 48, 16>}]} {
    %c0 = arith.constant 0 : index
    %c0_0 = arith.constant 0 : index
    %0 = vector.load %arg1[%c0, %c0_0] : memref<48x64xf32, #tpu.memory_space<vmem>>, vector<48x64xf32>
    %1 = arith.mulf %0, %0 : vector<48x64xf32>
    %cst = arith.constant dense<0.000000e+00> : vector<48xf32>
    %2 = vector.multi_reduction <add>, %1, %cst [1] : vector<48x64xf32> to vector<48xf32>
    %3 = vector.shape_cast %2 : vector<48xf32> to vector<48x1xf32>
    %cst_1 = arith.constant 6.400000e+01 : f32
    %4 = vector.broadcast %cst_1 : f32 to vector<48x1xf32>
    %5 = arith.divf %3, %4 : vector<48x1xf32>
    %cst_2 = arith.constant 1.1920929E-7 : f32
    %6 = vector.broadcast %cst_2 : f32 to vector<48x1xf32>
    %7 = arith.addf %5, %6 : vector<48x1xf32>
    %8 = math.rsqrt %7 : vector<48x1xf32>
    %9 = vector.broadcast %8 : vector<48x1xf32> to vector<48x64xf32>
    %10 = arith.mulf %0, %9 : vector<48x64xf32>
    %c0_3 = arith.constant 0 : index
    %c0_4 = arith.constant 0 : index
    %11 = vector.load %arg2[%c0_3, %c0_4] : memref<64x32xf32, #tpu.memory_space<vmem>>, vector<64x32xf32>
    %cst_5 = arith.constant dense<0.000000e+00> : vector<48x32xf32>
    %12 = tpu.matmul %10, %11, %cst_5 {dimension_numbers = #tpu.dot_dimension_numbers<[1], [0], [0], [1], [0, 0, 1, 1], [], []>} : vector<48x64xf32>, vector<64x32xf32>, vector<48x32xf32> -> vector<48x32xf32>
    %c0_6 = arith.constant 0 : index
    %c0_7 = arith.constant 0 : index
    %13 = vector.load %arg3[%c0_6, %c0_7] : memref<1x32xf32, #tpu.memory_space<vmem>>, vector<1x32xf32>
    %14 = vector.broadcast %13 : vector<1x32xf32> to vector<48x32xf32>
    %15 = arith.addf %12, %14 : vector<48x32xf32>
    %16 = arith.mulf %15, %15 : vector<48x32xf32>
    %cst_8 = arith.constant dense<0.000000e+00> : vector<48xf32>
    %17 = vector.multi_reduction <add>, %16, %cst_8 [1] : vector<48x32xf32> to vector<48xf32>
    %18 = vector.shape_cast %17 : vector<48xf32> to vector<48x1xf32>
    %cst_9 = arith.constant 3.200000e+01 : f32
    %19 = vector.broadcast %cst_9 : f32 to vector<48x1xf32>
    %20 = arith.divf %18, %19 : vector<48x1xf32>
    %cst_10 = arith.constant 1.1920929E-7 : f32
    %21 = vector.broadcast %cst_10 : f32 to vector<48x1xf32>
    %22 = arith.addf %20, %21 : vector<48x1xf32>
    %23 = math.rsqrt %22 : vector<48x1xf32>
    %24 = vector.broadcast %23 : vector<48x1xf32> to vector<48x32xf32>
    %25 = arith.mulf %15, %24 : vector<48x32xf32>
    %cst_11 = arith.constant 0.707106769 : f32
    %26 = vector.broadcast %cst_11 : f32 to vector<48x32xf32>
    %27 = arith.mulf %25, %26 : vector<48x32xf32>
    %28 = math.erf %27 : vector<48x32xf32>
    %cst_12 = arith.constant 1.000000e+00 : f32
    %29 = vector.broadcast %cst_12 : f32 to vector<48x32xf32>
    %30 = arith.addf %29, %28 : vector<48x32xf32>
    %31 = arith.mulf %25, %30 : vector<48x32xf32>
    %c0_13 = arith.constant 0 : index
    %c0_14 = arith.constant 0 : index
    %32 = vector.load %arg4[%c0_13, %c0_14] : memref<32x16xf32, #tpu.memory_space<vmem>>, vector<32x16xf32>
    %cst_15 = arith.constant dense<0.000000e+00> : vector<48x16xf32>
    %33 = tpu.matmul %31, %32, %cst_15 {dimension_numbers = #tpu.dot_dimension_numbers<[1], [0], [0], [1], [0, 0, 1, 1], [], []>} : vector<48x32xf32>, vector<32x16xf32>, vector<48x16xf32> -> vector<48x16xf32>
    %c0_16 = arith.constant 0 : index
    %c0_17 = arith.constant 0 : index
    %34 = vector.load %arg5[%c0_16, %c0_17] : memref<1x16xf32, #tpu.memory_space<vmem>>, vector<1x16xf32>
    %35 = vector.broadcast %34 : vector<1x16xf32> to vector<48x16xf32>
    %36 = arith.addf %33, %35 : vector<48x16xf32>
    %c0_18 = arith.constant 0 : index
    %c0_19 = arith.constant 0 : index
    %37 = vector.load %arg6[%c0_18, %c0_19] : memref<48x16xf32, #tpu.memory_space<vmem>>, vector<48x16xf32>
    tpu.vector_store %arg6[%c0_18, %c0_19], %36 {strides = array<i32>} : memref<48x16xf32, #tpu.memory_space<vmem>>, vector<48x16xf32>,
    return
  }
  func.func @transform_0(%arg0: i32) -> (i32, i32) {
    %c0_i32 = arith.constant 0 : i32
    %c0_i32_0 = arith.constant 0 : i32
    return %arg0, %c0_i32 : i32, i32
  }
  func.func @transform_1(%arg0: i32) -> (i32, i32) {
    %c0_i32 = arith.constant 0 : i32
    %c0_i32_0 = arith.constant 0 : i32
    %c0_i32_1 = arith.constant 0 : i32
    return %c0_i32, %c0_i32_0 : i32, i32
  }
  func.func @transform_2(%arg0: i32) -> (i32, i32) {
    %c0_i32 = arith.constant 0 : i32
    %c0_i32_0 = arith.constant 0 : i32
    %c0_i32_1 = arith.constant 0 : i32
    return %c0_i32, %c0_i32_0 : i32, i32
  }
  func.func @transform_3(%arg0: i32) -> (i32, i32) {
    %c0_i32 = arith.constant 0 : i32
    %c0_i32_0 = arith.constant 0 : i32
    %c0_i32_1 = arith.constant 0 : i32
    return %c0_i32, %c0_i32_0 : i32, i32
  }
  func.func @transform_4(%arg0: i32) -> (i32, i32) {
    %c0_i32 = arith.constant 0 : i32
    %c0_i32_0 = arith.constant 0 : i32
    %c0_i32_1 = arith.constant 0 : i32
    return %c0_i32, %c0_i32_0 : i32, i32
  }
  func.func @transform_5(%arg0: i32) -> (i32, i32) {
    %c0_i32 = arith.constant 0 : i32
    %c0_i32_0 = arith.constant 0 : i32
    return %arg0, %c0_i32 : i32, i32
  }
}

</mosaic_0001>

<llo_original>
// kernel: adapter_forward.1
$region0: #{adapter_forward.1}
  #allocation0 [shape = 'u32[]', space=smem, size = 0x4, offset = 0x4, fixed_abs, tag = 'smem constant byte address 0x4 - core index']
  #allocation1 [shape = 'u32[144,128]{1,0:T(1,128)}', space=vmem, size = 0x12000, scoped, tag = 'internal scratch']
  %s0 = inlined_call_operand.vmem [shape: f32[50,64], index: 0, kind: input, shape index: {}]
  %s1 = inlined_call_operand.vmem [shape: f32[64,32], index: 1, kind: input, shape index: {}]
  %s2 = inlined_call_operand.vmem [shape: f32[1,32], index: 2, kind: input, shape index: {}]
  %s3 = inlined_call_operand.vmem [shape: f32[32,16], index: 3, kind: input, shape index: {}]
  %s4 = inlined_call_operand.vmem [shape: f32[1,16], index: 4, kind: input, shape index: {}]
  %s5 = inlined_call_operand.vmem [shape: f32[50,16], index: 5, kind: output, shape index: {}]
  %s6 = sld [smem:[#allocation0]]
  $region101: #{adapter_forward.1} parent=0
    _
  %s8 = ssub.s32 1, %s6
  %s9 = scalar_select 0, %s8, %s6
  $region1: #{adapter_forward.1} parent=0
    #allocation2 [shape = 'u8[49152]{0}', space=vmem, size = 0xc000, scoped, tag = 'output window, operand 0']
    loop: start=0, step=1, limit=4
    $region2: #{adapter_forward.1} parent=1 // loop_pre_header
      _
    $region3: #{adapter_forward.1} parent=1 // loop_header
      %s11 = sphi 0, %s15
      %p12 = scmp.ge.s32.totalorder %s11, 4
      %s21 = sphi 0, %s23
      %s24 = sphi 0, %s21
      %s25 = sphi 0, %s24
      %s41 = sphi 0, %s25
      %s45 = sphi 0, %s45
      %s47 = sphi 0, %s45
      %s48 = sphi 0, %s47
      %s62 = sphi 0, %s48
      %s66 = sphi 0, %s66
      %s68 = sphi 0, %s66
      %s69 = sphi 0, %s68
      %s83 = sphi 0, %s69
      %s87 = sphi 0, %s87
      %s89 = sphi 0, %s87
      %s90 = sphi 0, %s89
      %s104 = sphi 0, %s90
      %s108 = sphi 0, %s108
      %s110 = sphi 0, %s108
      %s111 = sphi 0, %s110
      %s125 = sphi 0, %s111
      %s131 = sphi 0, %s133
      %s134 = sphi 0, %s131
      %s135 = sphi 0, %s134
      %s151 = sphi 0, %s135
    $region4: #{adapter_forward.1} parent=1 // loop_header_branch
      %14 = sbr.rel (%p12) target = $region8
    $region5: #{adapter_forward.1} parent=1 // loop_body
      %s16 = ssub.s32 %s11, 1
      %s17 = ssub.s32 %s11, 2
      %s18 = sadd.s32 %s11, 1
      %s19 = ssub.s32 %s11, %s18
      %p20 = scmp.eq.s32.totalorder %s19, 0
      %s22 = sadd.s32 %s21, 1
      %s23 = scalar_select %p20, %s21, %s22
      %p26 = pneg %p20
      %p27 = scmp.eq.s32.totalorder %s11, 1
      %p28 = por %p26, %p27
      %p29 = scmp.ne.s32.totalorder %s21, %s24
      %p30 = scmp.eq.s32.totalorder %s11, 0
      %p31 = por %p29, %p30
      %p32 = scmp.ne.s32.totalorder %s21, %s24
      %p33 = scmp.eq.s32.totalorder %s16, 1
      %p34 = por %p32, %p33
      %p35 = scmp.ne.s32.totalorder %s24, %s25
      %p36 = scmp.eq.s32.totalorder %s16, 0
      %p37 = por %p35, %p36
      %p38 = scmp.ne.s32.totalorder %s24, %s25
      %p39 = scmp.eq.s32.totalorder %s17, 1
      %p40 = por %p38, %p39
      %p42 = scmp.ne.s32.totalorder %s25, %s41
      %p43 = scmp.eq.s32.totalorder %s17, 0
      %p44 = por %p42, %p43
      %s46 = sadd.s32 %s45, 1
      %p49 = scmp.eq.s32.totalorder %s11, 1
      %p50 = scmp.ne.s32.totalorder %s45, %s47
      %p51 = scmp.eq.s32.totalorder %s11, 0
      %p52 = por %p50, %p51
      %p53 = scmp.ne.s32.totalorder %s45, %s47
      %p54 = scmp.eq.s32.totalorder %s16, 1
      %p55 = por %p53, %p54
      %p56 = scmp.ne.s32.totalorder %s47, %s48
      %p57 = scmp.eq.s32.totalorder %s16, 0
      %p58 = por %p56, %p57
      %p59 = scmp.ne.s32.totalorder %s47, %s48
      %p60 = scmp.eq.s32.totalorder %s17, 1
      %p61 = por %p59, %p60
      %p63 = scmp.ne.s32.totalorder %s48, %s62
      %p64 = scmp.eq.s32.totalorder %s17, 0
      %p65 = por %p63, %p64
      %s67 = sadd.s32 %s66, 1
      %p70 = scmp.eq.s32.totalorder %s11, 1
      %p71 = scmp.ne.s32.totalorder %s66, %s68
      %p72 = scmp.eq.s32.totalorder %s11, 0
      %p73 = por %p71, %p72
      %p74 = scmp.ne.s32.totalorder %s66, %s68
      %p75 = scmp.eq.s32.totalorder %s16, 1
      %p76 = por %p74, %p75
      %p77 = scmp.ne.s32.totalorder %s68, %s69
      %p78 = scmp.eq.s32.totalorder %s16, 0
      %p79 = por %p77, %p78
      %p80 = scmp.ne.s32.totalorder %s68, %s69
      %p81 = scmp.eq.s32.totalorder %s17, 1
      %p82 = por %p80, %p81
      %p84 = scmp.ne.s32.totalorder %s69, %s83
      %p85 = scmp.eq.s32.totalorder %s17, 0
      %p86 = por %p84, %p85
      %s88 = sadd.s32 %s87, 1
      %p91 = scmp.eq.s32.totalorder %s11, 1
      %p92 = scmp.ne.s32.totalorder %s87, %s89
      %p93 = scmp.eq.s32.totalorder %s11, 0
      %p94 = por %p92, %p93
      %p95 = scmp.ne.s32.totalorder %s87, %s89
      %p96 = scmp.eq.s32.totalorder %s16, 1
      %p97 = por %p95, %p96
      %p98 = scmp.ne.s32.totalorder %s89, %s90
      %p99 = scmp.eq.s32.totalorder %s16, 0
      %p100 = por %p98, %p99
      %p101 = scmp.ne.s32.totalorder %s89, %s90
      %p102 = scmp.eq.s32.totalorder %s17, 1
      %p103 = por %p101, %p102
      %p105 = scmp.ne.s32.totalorder %s90, %s104
      %p106 = scmp.eq.s32.totalorder %s17, 0
      %p107 = por %p105, %p106
      %s109 = sadd.s32 %s108, 1
      %p112 = scmp.eq.s32.totalorder %s11, 1
      %p113 = scmp.ne.s32.totalorder %s108, %s110
      %p114 = scmp.eq.s32.totalorder %s11, 0
      %p115 = por %p113, %p114
      %p116 = scmp.ne.s32.totalorder %s108, %s110
      %p117 = scmp.eq.s32.totalorder %s16, 1
      %p118 = por %p116, %p117
      %p119 = scmp.ne.s32.totalorder %s110, %s111
      %p120 = scmp.eq.s32.totalorder %s16, 0
      %p121 = por %p119, %p120
      %p122 = scmp.ne.s32.totalorder %s110, %s111
      %p123 = scmp.eq.s32.totalorder %s17, 1
      %p124 = por %p122, %p123
      %p126 = scmp.ne.s32.totalorder %s111, %s125
      %p127 = scmp.eq.s32.totalorder %s17, 0
      %p128 = por %p126, %p127
      %s129 = ssub.s32 %s11, %s18
      %p130 = scmp.eq.s32.totalorder %s129, 0
      %s132 = sadd.s32 %s131, 1
      %s133 = scalar_select %p130, %s131, %s132
      %p136 = pneg %p130
      %p137 = scmp.eq.s32.totalorder %s11, 1
      %p138 = por %p136, %p137
      %p139 = scmp.ne.s32.totalorder %s131, %s134
      %p140 = scmp.eq.s32.totalorder %s11, 0
      %p141 = por %p139, %p140
      %p142 = scmp.ne.s32.totalorder %s131, %s134
      %p143 = scmp.eq.s32.totalorder %s16, 1
      %p144 = por %p142, %p143
      %p145 = scmp.ne.s32.totalorder %s134, %s135
      %p146 = scmp.eq.s32.totalorder %s16, 0
      %p147 = por %p145, %p146
      %p148 = scmp.ne.s32.totalorder %s134, %s135
      %p149 = scmp.eq.s32.totalorder %s17, 1
      %p150 = por %p148, %p149
      %p152 = scmp.ne.s32.totalorder %s135, %s151
      %p153 = scmp.eq.s32.totalorder %s17, 0
      %p154 = por %p152, %p153
      %p155 = scmp.le.s32.totalorder 1, %s11
      %p156 = scmp.lt.s32.totalorder %s11, 3
      %p157 = pnand %p155, %p156
      %p158 = pneg %p157
      // Predicated region
      $region9: #{adapter_forward.1} parent=5 // pred_check
        _
      $region10: #{adapter_forward.1} parent=5 // pred_check_branch
        %160 = sbr.rel (%p157) target = $region12
      $region11: #{adapter_forward.1} parent=5 // pred_region
        %s161 = ssub.s32 %s11, 1
        // Predicated region
        $region13: #{adapter_forward.1} parent=11 // pred_check
          %p162 = pneg %p58
        $region14: #{adapter_forward.1} parent=11 // pred_check_branch
          %164 = sbr.rel (%p162) target = $region16
        $region15: #{adapter_forward.1} parent=11 // pred_region
          _
        $region16: #{adapter_forward.1} parent=11 // pred_fallthru
          _
        // Predicated region
        $region17: #{adapter_forward.1} parent=11 // pred_check
          %p165 = pneg %p79
        $region18: #{adapter_forward.1} parent=11 // pred_check_branch
          %167 = sbr.rel (%p165) target = $region20
        $region19: #{adapter_forward.1} parent=11 // pred_region
          _
        $region20: #{adapter_forward.1} parent=11 // pred_fallthru
          _
        // Predicated region
        $region21: #{adapter_forward.1} parent=11 // pred_check
          %p168 = pneg %p100
        $region22: #{adapter_forward.1} parent=11 // pred_check_branch
          %170 = sbr.rel (%p168) target = $region24
        $region23: #{adapter_forward.1} parent=11 // pred_region
          _
        $region24: #{adapter_forward.1} parent=11 // pred_fallthru
          _
        // Predicated region
        $region25: #{adapter_forward.1} parent=11 // pred_check
          %p171 = pneg %p121
        $region26: #{adapter_forward.1} parent=11 // pred_check_branch
          %173 = sbr.rel (%p171) target = $region28
        $region27: #{adapter_forward.1} parent=11 // pred_region
          _
        $region28: #{adapter_forward.1} parent=11 // pred_fallthru
          _
      $region12: #{adapter_forward.1} parent=5 // pred_fallthru
        _
      %p174 = scmp.lt.s32.totalorder %s11, 2
      // Predicated region
      $region29: #{adapter_forward.1} parent=5 // pred_check
        %p175 = pneg %p174
      $region30: #{adapter_forward.1} parent=5 // pred_check_branch
        %177 = sbr.rel (%p175) target = $region32
      $region31: #{adapter_forward.1} parent=5 // pred_region
        // Predicated region
        $region33: #{adapter_forward.1} parent=31 // pred_check
          %p178 = pneg %p31
        $region34: #{adapter_forward.1} parent=31 // pred_check_branch
          %180 = sbr.rel (%p178) target = $region36
        $region35: #{adapter_forward.1} parent=31 // pred_region
          %s181 = smul.u32 6, %s11
          %s182 = ssub.s32 7, %s181
          %p183 = scmp.lt.s32.totalorder %s182, 6
          %s184 = scalar_select %p183, %s182, 6
          %s185 = smul.u32 128, %s184
          %p186 = scmp.lt.s32.totalorder %s181, 6
          %s187 = scalar_select %p186, %s181, 6
          %s188 = smul.addr %s187, 8
          %s189 = scalar_lea.vmem %s0, %s188
          %s190 = smul.u32 6, %s11
          %s191 = ssub.s32 7, %s190
          %p192 = scmp.lt.s32.totalorder %s191, 6
          %s193 = scalar_select %p192, %s191, 6
          %s194 = smul.u32 128, %s193
        $region36: #{adapter_forward.1} parent=31 // pred_fallthru
          _
      $region32: #{adapter_forward.1} parent=5 // pred_fallthru
        _
      %p195 = scmp.le.s32.totalorder 1, %s11
      %p196 = scmp.lt.s32.totalorder %s11, 3
      %p197 = pnand %p195, %p196
      %p198 = pneg %p197
      // Predicated region
      $region37: #{adapter_forward.1} parent=5 // pred_check
        _
      $region38: #{adapter_forward.1} parent=5 // pred_check_branch
        %200 = sbr.rel (%p197) target = $region40
      $region39: #{adapter_forward.1} parent=5 // pred_region
        %s201 = ssub.s32 %s11, 1
        %s202 = smul.u32 6, %s16
        %s203 = ssub.s32 7, %s202
        %p204 = scmp.lt.s32.totalorder %s203, 6
        %s205 = scalar_select %p204, %s203, 6
        %s206 = smul.u32 128, %s205
        %p207 = scmp.lt.s32.totalorder %s202, 6
        %s208 = scalar_select %p207, %s202, 6
        %s209 = smul.addr %s208, 8
        %s210 = scalar_lea.vmem %s0, %s209
        %p211 = pneg %p37
        %p212 = pneg %p34
        %p213 = pneg %p58
        %p214 = pneg %p55
        %p215 = pneg %p79
        %p216 = pneg %p76
        %p217 = pneg %p100
        %p218 = pneg %p97
        %p219 = pneg %p121
        %p220 = pneg %p118
        %p221 = pneg %p147
        %p222 = pneg %p144
        %s223 = sand.u32 %s134, 1
        %s224 = sand.u32 %s134, 1
        %s225 = smul.addr %s224, 48
        %s226 = scalar_lea.vmem [#allocation2], %s225
        %s227 = smul.u32 6, %s16
        %s228 = ssub.s32 7, %s227
        %p229 = scmp.lt.s32.totalorder %s228, 6
        %s230 = scalar_select %p229, %s228, 6
        %s231 = smul.u32 128, %s230
        %p232 = scmp.lt.s32.totalorder %s227, 6
        %s233 = scalar_select %p232, %s227, 6
        %s234 = smul.addr %s233, 8
        %s235 = scalar_lea.vmem %s0, %s234
        %s236 = smul.u32 6, %s16
        %s237 = ssub.s32 7, %s236
        %p238 = scmp.lt.s32.totalorder %s237, 6
        %s239 = scalar_select %p238, %s237, 6
        %s240 = smul.u32 128, %s239
        %s241 = smul.u32 6, %s16
        %s242 = ssub.s32 7, %s241
        %p243 = scmp.lt.s32.totalorder %s242, 6
        %s244 = scalar_select %p243, %s242, 6
        %s245 = smul.u32 128, %s244
        %v246 = vld [vmem:[%s235] sm:$0xff]
        %v247 = vld [vmem:[%s235 + $0x8] sm:$0xff]
        %v248 = vld [vmem:[%s235 + $0x10] sm:$0xff]
        %v249 = vld [vmem:[%s235 + $0x18] sm:$0xff]
        %v250 = vld [vmem:[%s235 + $0x20] sm:$0xff]
        %v251 = vld [vmem:[%s235 + $0x28] sm:$0xff]
        %v252 = vmul.f32 %v246, %v246
        %v253 = vmul.f32 %v247, %v247
        %v254 = vmul.f32 %v248, %v248
        %v255 = vmul.f32 %v249, %v249
        %v256 = vmul.f32 %v250, %v250
        %v257 = vmul.f32 %v251, %v251
        %vm258 = vcmask 523264
        %v259 = vsel %vm258, %v252, 0.0
        %260 = vadd.xlane.f32.xlu0 %v259
        %v261 = vpop.xlane.xlu0 %260
        %v262 = vsel %vm258, %v253, 0.0
        %263 = vadd.xlane.f32.xlu0 %v262
        %v264 = vpop.xlane.xlu0 %263
        %v265 = vsel %vm258, %v254, 0.0
        %266 = vadd.xlane.f32.xlu0 %v265
        %v267 = vpop.xlane.xlu0 %266
        %v268 = vsel %vm258, %v255, 0.0
        %269 = vadd.xlane.f32.xlu0 %v268
        %v270 = vpop.xlane.xlu0 %269
        %v271 = vsel %vm258, %v256, 0.0
        %272 = vadd.xlane.f32.xlu0 %v271
        %v273 = vpop.xlane.xlu0 %272
        %v274 = vsel %vm258, %v257, 0.0
        %275 = vadd.xlane.f32.xlu0 %v274
        %v276 = vpop.xlane.xlu0 %275
        %v277 = vrcp.pop 64.0
        %v278 = vmul.f32 %v261, %v277
        %v279 = vmul.f32 %v264, %v277
        %v280 = vmul.f32 %v267, %v277
        %v281 = vmul.f32 %v270, %v277
        %v282 = vmul.f32 %v273, %v277
        %v283 = vmul.f32 %v276, %v277
        %v284 = vadd.f32 %v278, 1.1920929e-07
        %v285 = vadd.f32 %v279, 1.1920929e-07
        %v286 = vadd.f32 %v280, 1.1920929e-07
        %v287 = vadd.f32 %v281, 1.1920929e-07
        %v288 = vadd.f32 %v282, 1.1920929e-07
        %v289 = vadd.f32 %v283, 1.1920929e-07
        %v290 = vrsqrt.pop %v284
        %v291 = vrsqrt.pop %v285
        %v292 = vrsqrt.pop %v286
        %v293 = vrsqrt.pop %v287
        %v294 = vrsqrt.pop %v288
        %v295 = vrsqrt.pop %v289
        %v296 = vmul.f32 %v246, %v290
        %v297 = vmul.f32 %v247, %v291
        %v298 = vmul.f32 %v248, %v292
        %v299 = vmul.f32 %v249, %v293
        %v300 = vmul.f32 %v250, %v294
        %v301 = vmul.f32 %v251, %v295
        %v302 = vld [vmem:[%s1] sm:$0xff]
        %v303 = vld [vmem:[%s1 + $0x8] sm:$0xff]
        %v304 = vld [vmem:[%s1 + $0x10] sm:$0xff]
        %v305 = vld [vmem:[%s1 + $0x18] sm:$0xff]
        %v306 = vld [vmem:[%s1 + $0x20] sm:$0xff]
        %v307 = vld [vmem:[%s1 + $0x28] sm:$0xff]
        %v308 = vld [vmem:[%s1 + $0x30] sm:$0xff]
        %v309 = vld [vmem:[%s1 + $0x38] sm:$0xff]
        %v310 = vld [vmem:[%s2] sm:$0x1]
        %v312 = vlaneseq
        %v313 = vshrl.u32 %v312, 7
        %v314 = vsub.s32 0, %v313
        %v315 = vrot.slane %v310, %v314
        %v318 = vsel %vm258, %v296, 0
        %v321 = vsel %vm258, %v297, 0
        %v324 = vsel %vm258, %v298, 0
        %v327 = vsel %vm258, %v299, 0
        %v330 = vsel %vm258, %v300, 0
        %v333 = vsel %vm258, %v301, 0
        %335 = vmatprep.subr.mxu0 0.0
        %336 = vmatpush1.msra.mxu0 %v302
        %337 = vmatprep.subr.mxu0 0.0
        %338 = vmatpush1.msra.mxu0 %v303
        %339 = vmatprep.subr.mxu0 0.0
        %340 = vmatpush1.msra.mxu0 %v304
        %341 = vmatprep.subr.mxu0 0.0
        %342 = vmatpush1.msra.mxu0 %v305
        %343 = vmatprep.subr.mxu0 0.0
        %344 = vmatpush1.msra.mxu0 %v306
        %345 = vmatprep.subr.mxu0 0.0
        %346 = vmatpush1.msra.mxu0 %v307
        %347 = vmatprep.subr.mxu0 0.0
        %348 = vmatpush1.msra.mxu0 %v308
        %349 = vmatprep.subr.mxu0 0.0
        %350 = vmatpush1.msra.mxu0 %v309
        %351 = vmatprep.subr.mxu0 0.0
        %352 = vmatpush1.msra.mxu0 0.0
        %353 = vmatprep.subr.mxu0 0.0
        %354 = vmatpush1.msra.mxu0 0.0
        %355 = vmatprep.subr.mxu0 0.0
        %356 = vmatpush1.msra.mxu0 0.0
        %357 = vmatprep.subr.mxu0 0.0
        %358 = vmatpush1.msra.mxu0 0.0
        %359 = vmatprep.subr.mxu0 0.0
        %360 = vmatpush1.msra.mxu0 0.0
        %361 = vmatprep.subr.mxu0 0.0
        %362 = vmatpush1.msra.mxu0 0.0
        %363 = vmatprep.subr.mxu0 0.0
        %364 = vmatpush1.msra.mxu0 0.0
        %365 = vmatprep.subr.mxu0 0.0
        %366 = vmatpush1.msra.mxu0 0.0
        %367 = vmatprep.subr.mxu0 0.0
        %368 = vmatpush1.msra.mxu0 0.0
        %369 = vmatprep.subr.mxu0 0.0
        %370 = vmatpush1.msra.mxu0 0.0
        %371 = vmatprep.subr.mxu0 0.0
        %372 = vmatpush1.msra.mxu0 0.0
        %373 = vmatprep.subr.mxu0 0.0
        %374 = vmatpush1.msra.mxu0 0.0
        %375 = vmatprep.subr.mxu0 0.0
        %376 = vmatpush1.msra.mxu0 0.0
        %377 = vmatprep.subr.mxu0 0.0
        %378 = vmatpush1.msra.mxu0 0.0
        %379 = vmatprep.subr.mxu0 0.0
        %380 = vmatpush1.msra.mxu0 0.0
        %381 = vmatprep.subr.mxu0 0.0
        %382 = vmatpush1.msra.mxu0 0.0
        %383 = vmatprep.subr.mxu0 0.0
        %384 = vmatpush1.msra.mxu0 0.0
        %385 = vmatprep.subr.mxu0 0.0
        %386 = vmatpush1.msra.mxu0 0.0
        %387 = vmatprep.subr.mxu0 0.0
        %388 = vmatpush1.msra.mxu0 0.0
        %389 = vmatprep.subr.mxu0 0.0
        %390 = vmatpush1.msra.mxu0 0.0
        %391 = vmatprep.subr.mxu0 0.0
        %392 = vmatpush1.msra.mxu0 0.0
        %393 = vmatprep.subr.mxu0 0.0
        %394 = vmatpush1.msra.mxu0 0.0
        %395 = vmatprep.subr.mxu0 0.0
        %396 = vmatpush1.msra.mxu0 0.0
        %397 = vmatprep.subr.mxu0 0.0
        %398 = vmatpush1.msra.mxu0 0.0
        %399 = vmatprep.mubr.f32.mxu0 0.0
        %400 = vmatmul.mubr.f32.gmra.mrb[0].mxu0 %v318
        %v401 = vpop.f32.mrb[0].mxu0
        %v402 = vadd.f32 %v315, %v401
        %v403 = vpop.f32.mrb[0].mxu0
        %404 = vmatprep.mubr.f32.mxu0 0.0
        %405 = vmatmul.mubr.f32.gmra.mrb[0].mxu0 %v321
        %v406 = vpop.f32.mrb[0].mxu0
        %v407 = vadd.f32 %v315, %v406
        %v408 = vpop.f32.mrb[0].mxu0
        %409 = vmatprep.mubr.f32.mxu0 0.0
        %410 = vmatmul.mubr.f32.gmra.mrb[0].mxu0 %v324
        %v411 = vpop.f32.mrb[0].mxu0
        %v412 = vadd.f32 %v315, %v411
        %v413 = vpop.f32.mrb[0].mxu0
        %414 = vmatprep.mubr.f32.mxu0 0.0
        %415 = vmatmul.mubr.f32.gmra.mrb[0].mxu0 %v327
        %v416 = vpop.f32.mrb[0].mxu0
        %v417 = vadd.f32 %v315, %v416
        %v418 = vpop.f32.mrb[0].mxu0
        %419 = vmatprep.mubr.f32.mxu0 0.0
        %420 = vmatmul.mubr.f32.gmra.mrb[0].mxu0 %v330
        %v421 = vpop.f32.mrb[0].mxu0
        %v422 = vadd.f32 %v315, %v421
        %v423 = vpop.f32.mrb[0].mxu0
        %424 = vmatprep.mubr.f32.mxu0 0.0
        %425 = vmatmul.mubr.f32.gmra.mrb[0].mxu0 %v333
        %v426 = vpop.f32.mrb[0].mxu0
        %v427 = vadd.f32 %v315, %v426
        %v428 = vpop.f32.mrb[0].mxu0
        %429 = vdwg.mxu0
        %v430 = vmul.f32 %v402, %v402
        %v431 = vmul.f32 %v407, %v407
        %v432 = vmul.f32 %v412, %v412
        %v433 = vmul.f32 %v417, %v417
        %v434 = vmul.f32 %v422, %v422
        %v435 = vmul.f32 %v427, %v427
        %vm436 = vcmask 261120
        %v437 = vsel %vm436, %v430, 0.0
        %438 = vadd.xlane.f32.xlu0 %v437
        %v439 = vpop.xlane.xlu0 %438
        %v440 = vsel %vm436, %v431, 0.0
        %441 = vadd.xlane.f32.xlu0 %v440
        %v442 = vpop.xlane.xlu0 %441
        %v443 = vsel %vm436, %v432, 0.0
        %444 = vadd.xlane.f32.xlu0 %v443
        %v445 = vpop.xlane.xlu0 %444
        %v446 = vsel %vm436, %v433, 0.0
        %447 = vadd.xlane.f32.xlu0 %v446
        %v448 = vpop.xlane.xlu0 %447
        %v449 = vsel %vm436, %v434, 0.0
        %450 = vadd.xlane.f32.xlu0 %v449
        %v451 = vpop.xlane.xlu0 %450
        %v452 = vsel %vm436, %v435, 0.0
        %453 = vadd.xlane.f32.xlu0 %v452
        %v454 = vpop.xlane.xlu0 %453
        %v455 = vrcp.pop 32.0
        %v456 = vmul.f32 %v439, %v455
        %v457 = vmul.f32 %v442, %v455
        %v458 = vmul.f32 %v445, %v455
        %v459 = vmul.f32 %v448, %v455
        %v460 = vmul.f32 %v451, %v455
        %v461 = vmul.f32 %v454, %v455
        %v462 = vadd.f32 %v456, 1.1920929e-07
        %v463 = vadd.f32 %v457, 1.1920929e-07
        %v464 = vadd.f32 %v458, 1.1920929e-07
        %v465 = vadd.f32 %v459, 1.1920929e-07
        %v466 = vadd.f32 %v460, 1.1920929e-07
        %v467 = vadd.f32 %v461, 1.1920929e-07
        %v468 = vrsqrt.pop %v462
        %v469 = vrsqrt.pop %v463
        %v470 = vrsqrt.pop %v464
        %v471 = vrsqrt.pop %v465
        %v472 = vrsqrt.pop %v466
        %v473 = vrsqrt.pop %v467
        %v474 = vmul.f32 %v402, %v468
        %v475 = vmul.f32 %v407, %v469
        %v476 = vmul.f32 %v412, %v470
        %v477 = vmul.f32 %v417, %v471
        %v478 = vmul.f32 %v422, %v472
        %v479 = vmul.f32 %v427, %v473
        %v480 = vmul.f32 %v474, 0.70710677
        %v481 = vmul.f32 %v475, 0.70710677
        %v482 = vmul.f32 %v476, 0.70710677
        %v483 = vmul.f32 %v477, 0.70710677
        %v484 = vmul.f32 %v478, 0.70710677
        %v485 = vmul.f32 %v479, 0.70710677
        %v486 = verf.f32.pop %v480
        %v487 = verf.f32.pop %v481
        %v488 = verf.f32.pop %v482
        %v489 = verf.f32.pop %v483
        %v490 = verf.f32.pop %v484
        %v491 = verf.f32.pop %v485
        %v492 = vadd.f32 %v486, 1.0
        %v493 = vadd.f32 %v487, 1.0
        %v494 = vadd.f32 %v488, 1.0
        %v495 = vadd.f32 %v489, 1.0
        %v496 = vadd.f32 %v490, 1.0
        %v497 = vadd.f32 %v491, 1.0
        %v498 = vmul.f32 %v474, %v492
        %v499 = vmul.f32 %v475, %v493
        %v500 = vmul.f32 %v476, %v494
        %v501 = vmul.f32 %v477, %v495
        %v502 = vmul.f32 %v478, %v496
        %v503 = vmul.f32 %v479, %v497
        %v504 = vld [vmem:[%s3] sm:$0xff]
        %v505 = vld [vmem:[%s3 + $0x8] sm:$0xff]
        %v506 = vld [vmem:[%s3 + $0x10] sm:$0xff]
        %v507 = vld [vmem:[%s3 + $0x18] sm:$0xff]
        %v508 = vld [vmem:[%s4] sm:$0x1]
        %v510 = vlaneseq
        %v511 = vshrl.u32 %v510, 7
        %v512 = vsub.s32 0, %v511
        %v513 = vrot.slane %v508, %v512
        %v516 = vsel %vm436, %v498, 0
        %v519 = vsel %vm436, %v499, 0
        %v522 = vsel %vm436, %v500, 0
        %v525 = vsel %vm436, %v501, 0
        %v528 = vsel %vm436, %v502, 0
        %v531 = vsel %vm436, %v503, 0
        %533 = vmatprep.subr.mxu0 0.0
        %534 = vmatpush1.msra.mxu0 %v504
        %535 = vmatprep.subr.mxu0 0.0
        %536 = vmatpush1.msra.mxu0 %v505
        %537 = vmatprep.subr.mxu0 0.0
        %538 = vmatpush1.msra.mxu0 %v506
        %539 = vmatprep.subr.mxu0 0.0
        %540 = vmatpush1.msra.mxu0 %v507
        %541 = vmatprep.subr.mxu0 0.0
        %542 = vmatpush1.msra.mxu0 0.0
        %543 = vmatprep.subr.mxu0 0.0
        %544 = vmatpush1.msra.mxu0 0.0
        %545 = vmatprep.subr.mxu0 0.0
        %546 = vmatpush1.msra.mxu0 0.0
        %547 = vmatprep.subr.mxu0 0.0
        %548 = vmatpush1.msra.mxu0 0.0
        %549 = vmatprep.subr.mxu0 0.0
        %550 = vmatpush1.msra.mxu0 0.0
        %551 = vmatprep.subr.mxu0 0.0
        %552 = vmatpush1.msra.mxu0 0.0
        %553 = vmatprep.subr.mxu0 0.0
        %554 = vmatpush1.msra.mxu0 0.0
        %555 = vmatprep.subr.mxu0 0.0
        %556 = vmatpush1.msra.mxu0 0.0
        %557 = vmatprep.subr.mxu0 0.0
        %558 = vmatpush1.msra.mxu0 0.0
        %559 = vmatprep.subr.mxu0 0.0
        %560 = vmatpush1.msra.mxu0 0.0
        %561 = vmatprep.subr.mxu0 0.0
        %562 = vmatpush1.msra.mxu0 0.0
        %563 = vmatprep.subr.mxu0 0.0
        %564 = vmatpush1.msra.mxu0 0.0
        %565 = vmatprep.subr.mxu0 0.0
        %566 = vmatpush1.msra.mxu0 0.0
        %567 = vmatprep.subr.mxu0 0.0
        %568 = vmatpush1.msra.mxu0 0.0
        %569 = vmatprep.subr.mxu0 0.0
        %570 = vmatpush1.msra.mxu0 0.0
        %571 = vmatprep.subr.mxu0 0.0
        %572 = vmatpush1.msra.mxu0 0.0
        %573 = vmatprep.subr.mxu0 0.0
        %574 = vmatpush1.msra.mxu0 0.0
        %575 = vmatprep.subr.mxu0 0.0
        %576 = vmatpush1.msra.mxu0 0.0
        %577 = vmatprep.subr.mxu0 0.0
        %578 = vmatpush1.msra.mxu0 0.0
        %579 = vmatprep.subr.mxu0 0.0
        %580 = vmatpush1.msra.mxu0 0.0
        %581 = vmatprep.subr.mxu0 0.0
        %582 = vmatpush1.msra.mxu0 0.0
        %583 = vmatprep.subr.mxu0 0.0
        %584 = vmatpush1.msra.mxu0 0.0
        %585 = vmatprep.subr.mxu0 0.0
        %586 = vmatpush1.msra.mxu0 0.0
        %587 = vmatprep.subr.mxu0 0.0
        %588 = vmatpush1.msra.mxu0 0.0
        %589 = vmatprep.subr.mxu0 0.0
        %590 = vmatpush1.msra.mxu0 0.0
        %591 = vmatprep.subr.mxu0 0.0
        %592 = vmatpush1.msra.mxu0 0.0
        %593 = vmatprep.subr.mxu0 0.0
        %594 = vmatpush1.msra.mxu0 0.0
        %595 = vmatprep.subr.mxu0 0.0
        %596 = vmatpush1.msra.mxu0 0.0
        %597 = vmatprep.mubr.f32.mxu0 0.0
        %598 = vmatmul.mubr.f32.gmra.mrb[0].mxu0 %v516
        %v599 = vpop.f32.mrb[0].mxu0
        %v600 = vadd.f32 %v513, %v599
        %v601 = vpop.f32.mrb[0].mxu0
        %602 = vmatprep.mubr.f32.mxu0 0.0
        %603 = vmatmul.mubr.f32.gmra.mrb[0].mxu0 %v519
        %v604 = vpop.f32.mrb[0].mxu0
        %v605 = vadd.f32 %v513, %v604
        %v606 = vpop.f32.mrb[0].mxu0
        %607 = vmatprep.mubr.f32.mxu0 0.0
        %608 = vmatmul.mubr.f32.gmra.mrb[0].mxu0 %v522
        %v609 = vpop.f32.mrb[0].mxu0
        %v610 = vadd.f32 %v513, %v609
        %v611 = vpop.f32.mrb[0].mxu0
        %612 = vmatprep.mubr.f32.mxu0 0.0
        %613 = vmatmul.mubr.f32.gmra.mrb[0].mxu0 %v525
        %v614 = vpop.f32.mrb[0].mxu0
        %v615 = vadd.f32 %v513, %v614
        %v616 = vpop.f32.mrb[0].mxu0
        %617 = vmatprep.mubr.f32.mxu0 0.0
        %618 = vmatmul.mubr.f32.gmra.mrb[0].mxu0 %v528
        %v619 = vpop.f32.mrb[0].mxu0
        %v620 = vadd.f32 %v513, %v619
        %v621 = vpop.f32.mrb[0].mxu0
        %622 = vmatprep.mubr.f32.mxu0 0.0
        %623 = vmatmul.mubr.f32.gmra.mrb[0].mxu0 %v531
        %v624 = vpop.f32.mrb[0].mxu0
        %v625 = vadd.f32 %v513, %v624
        %v626 = vpop.f32.mrb[0].mxu0
        %627 = vdwg.mxu0
        %vm628 = vcmask 130048
        %629 = vst.msk [vmem:[%s226] sm:$0xff] %vm628, %v600
        %630 = vst.msk [vmem:[%s226 + $0x8] sm:$0xff] %vm628, %v605
        %631 = vst.msk [vmem:[%s226 + $0x10] sm:$0xff] %vm628, %v610
        %632 = vst.msk [vmem:[%s226 + $0x18] sm:$0xff] %vm628, %v615
        %633 = vst.msk [vmem:[%s226 + $0x20] sm:$0xff] %vm628, %v620
        %634 = vst.msk [vmem:[%s226 + $0x28] sm:$0xff] %vm628, %v625
        %s635 = sand.u32 %s134, 1
        %s636 = sand.u32 %s134, 1
        %s637 = smul.addr %s636, 48
        %s638 = scalar_lea.vmem [#allocation2], %s637
        // Predicated region
        $region41: #{adapter_forward.1} parent=39 // pred_check
          %p639 = pneg %p144
        $region42: #{adapter_forward.1} parent=39 // pred_check_branch
          %641 = sbr.rel (%p639) target = $region44
        $region43: #{adapter_forward.1} parent=39 // pred_region
          %s642 = smul.u32 6, %s16
          %s643 = ssub.s32 7, %s642
          %p644 = scmp.lt.s32.totalorder %s643, 6
          %s645 = scalar_select %p644, %s643, 6
          %s646 = smul.u32 128, %s645
          %p647 = scmp.ne.s32.totalorder 0, %s646
          %s648 = smul.addr %s642, 8
          %s649 = scalar_lea.vmem %s5, %s648
          // Predicated region
          $region45: #{adapter_forward.1} parent=43 // pred_check
            %p650 = pneg %p647
          $region46: #{adapter_forward.1} parent=43 // pred_check_branch
            %652 = sbr.rel (%p650) target = $region48
          $region47: #{adapter_forward.1} parent=43 // pred_region
            // Predicated region
            $region49: #{adapter_forward.1} parent=47 // pred_check
              _
            $region50: #{adapter_forward.1} parent=47 // pred_check_branch
              %654 = sbr.rel (0) target = $region52
            $region51: #{adapter_forward.1} parent=47 // pred_region
              // Predicated region
              $region71: #{adapter_forward.1} parent=51 // pred_check
                _
              $region72: #{adapter_forward.1} parent=51 // pred_check_branch
                %714 = sbr.rel (0) target = $region74
              $region73: #{adapter_forward.1} parent=51 // pred_region
                %s715 = sdiv.u32.pop %s645, 6
                %s716 = srem.u32.pop %s645, 6
                // While loop
                $region75: #{adapter_forward.1} parent=73 // loop_pre_header
                  _
                $region76: #{adapter_forward.1} parent=73 // loop_header
                  %s718 = sphi 0, %s720
                  %p719 = scmp.ge.s32.totalorder %s718, %s715
                  %s723 = sphi 0, %s740
                  %s724 = sphi %s638, %s743
                  %s725 = sphi %s649, %s744
                $region77: #{adapter_forward.1} parent=73 // loop_header_branch
                  %722 = sbr.rel (%p719) target = $region81
                $region78: #{adapter_forward.1} parent=73 // loop_body
                  %v726 = vld [vmem:[%s724] sm:$0xff]
                  %727 = vst [vmem:[%s725] sm:$0xff] %v726
                  %v728 = vld [vmem:[%s724 + $0x8] sm:$0xff]
                  %729 = vst [vmem:[%s725 + $0x8] sm:$0xff] %v728
                  %v730 = vld [vmem:[%s724 + $0x10] sm:$0xff]
                  %731 = vst [vmem:[%s725 + $0x10] sm:$0xff] %v730
                  %v732 = vld [vmem:[%s724 + $0x18] sm:$0xff]
                  %733 = vst [vmem:[%s725 + $0x18] sm:$0xff] %v732
                  %v734 = vld [vmem:[%s724 + $0x20] sm:$0xff]
                  %735 = vst [vmem:[%s725 + $0x20] sm:$0xff] %v734
                  %v736 = vld [vmem:[%s724 + $0x28] sm:$0xff]
                  %737 = vst [vmem:[%s725 + $0x28] sm:$0xff] %v736
                  %s738 = sadd.s32 1, %s723
                  %p739 = scmp.ge.s32.totalorder %s738, %s715
                  %s740 = scalar_select %p739, 0, %s738
                  %s741 = smul.u32 %s740, 48
                  %s742 = smul.u32 %s740, 48
                  %s743 = scalar_lea.vmem %s638, %s741 [#allocation2]
                  %s744 = scalar_lea.vmem %s649, %s742
                $region79: #{adapter_forward.1} parent=73 // loop_footer
                  %s720 = sadd.s32 %s718, 1
                $region80: #{adapter_forward.1} parent=73 // loop_footer_branch
                  %717 = sbr.rel target = $region76
                $region81: #{adapter_forward.1} parent=73 // loop_exit
                  _
                %s745 = sdiv.u32.pop %s645, 6
                %s746 = srem.u32.pop %s645, 6
                %s747 = smul.u32 %s745, 6
                %s748 = smul.u32 8, %s747
                %s749 = scalar_lea.vmem %s638, %s748 [#allocation2]
                %s750 = smul.u32 8, %s747
                %s751 = scalar_lea.vmem %s649, %s750
                // While loop
                $region82: #{adapter_forward.1} parent=73 // loop_pre_header
                  _
                $region83: #{adapter_forward.1} parent=73 // loop_header
                  %s753 = sphi 0, %s755
                  %p754 = scmp.ge.s32.totalorder %s753, %s746
                  %s758 = sphi 0, %s765
                  %s759 = sphi %s749, %s768
                  %s760 = sphi %s751, %s769
                $region84: #{adapter_forward.1} parent=73 // loop_header_branch
                  %757 = sbr.rel (%p754) target = $region88
                $region85: #{adapter_forward.1} parent=73 // loop_body
                  %v761 = vld [vmem:[%s759] sm:$0xff]
                  %762 = vst [vmem:[%s760] sm:$0xff] %v761
                  %s763 = sadd.s32 1, %s758
                  %p764 = scmp.ge.s32.totalorder %s763, %s746
                  %s765 = scalar_select %p764, 0, %s763
                  %s766 = smul.u32 %s765, 8
                  %s767 = smul.u32 %s765, 8
                  %s768 = scalar_lea.vmem %s749, %s766 [#allocation2]
                  %s769 = scalar_lea.vmem %s751, %s767
                $region86: #{adapter_forward.1} parent=73 // loop_footer
                  %s755 = sadd.s32 %s753, 1
                $region87: #{adapter_forward.1} parent=73 // loop_footer_branch
                  %752 = sbr.rel target = $region83
                $region88: #{adapter_forward.1} parent=73 // loop_exit
                  _
              $region74: #{adapter_forward.1} parent=51 // pred_fallthru
                _
              // Predicated region
              $region89: #{adapter_forward.1} parent=51 // pred_check
                _
              $region90: #{adapter_forward.1} parent=51 // pred_check_branch
                %771 = sbr.rel target = $region92
              $region91: #{adapter_forward.1} parent=51 // pred_region
                _
              $region92: #{adapter_forward.1} parent=51 // pred_fallthru
                _
            $region52: #{adapter_forward.1} parent=47 // pred_fallthru
              _
            // Predicated region
            $region53: #{adapter_forward.1} parent=47 // pred_check
              _
            $region54: #{adapter_forward.1} parent=47 // pred_check_branch
              %656 = sbr.rel target = $region56
            $region55: #{adapter_forward.1} parent=47 // pred_region
              %s658 = sdiv.u32.pop %s645, 6
              %s659 = srem.u32.pop %s645, 6
              // While loop
              $region57: #{adapter_forward.1} parent=55 // loop_pre_header
                _
              $region58: #{adapter_forward.1} parent=55 // loop_header
                %s661 = sphi 0, %s663
                %p662 = scmp.ge.s32.totalorder %s661, %s658
                %s666 = sphi 0, %s683
                %s667 = sphi %s638, %s686
                %s668 = sphi %s649, %s687
              $region59: #{adapter_forward.1} parent=55 // loop_header_branch
                %665 = sbr.rel (%p662) target = $region63
              $region60: #{adapter_forward.1} parent=55 // loop_body
                %v669 = vld [vmem:[%s667] sm:$0xff]
                %670 = vst [vmem:[%s668] sm:$0xff] %v669
                %v671 = vld [vmem:[%s667 + $0x8] sm:$0xff]
                %672 = vst [vmem:[%s668 + $0x8] sm:$0xff] %v671
                %v673 = vld [vmem:[%s667 + $0x10] sm:$0xff]
                %674 = vst [vmem:[%s668 + $0x10] sm:$0xff] %v673
                %v675 = vld [vmem:[%s667 + $0x18] sm:$0xff]
                %676 = vst [vmem:[%s668 + $0x18] sm:$0xff] %v675
                %v677 = vld [vmem:[%s667 + $0x20] sm:$0xff]
                %678 = vst [vmem:[%s668 + $0x20] sm:$0xff] %v677
                %v679 = vld [vmem:[%s667 + $0x28] sm:$0xff]
                %680 = vst [vmem:[%s668 + $0x28] sm:$0xff] %v679
                %s681 = sadd.s32 1, %s666
                %p682 = scmp.ge.s32.totalorder %s681, %s658
                %s683 = scalar_select %p682, 0, %s681
                %s684 = smul.u32 %s683, 48
                %s685 = smul.u32 %s683, 48
                %s686 = scalar_lea.vmem %s638, %s684 [#allocation2]
                %s687 = scalar_lea.vmem %s649, %s685
              $region61: #{adapter_forward.1} parent=55 // loop_footer
                %s663 = sadd.s32 %s661, 1
              $region62: #{adapter_forward.1} parent=55 // loop_footer_branch
                %660 = sbr.rel target = $region58
              $region63: #{adapter_forward.1} parent=55 // loop_exit
                _
              %s688 = sdiv.u32.pop %s645, 6
              %s689 = srem.u32.pop %s645, 6
              %s690 = smul.u32 %s688, 6
              %s691 = smul.u32 8, %s690
              %s692 = scalar_lea.vmem %s638, %s691 [#allocation2]
              %s693 = smul.u32 8, %s690
              %s694 = scalar_lea.vmem %s649, %s693
              // While loop
              $region64: #{adapter_forward.1} parent=55 // loop_pre_header
                _
              $region65: #{adapter_forward.1} parent=55 // loop_header
                %s696 = sphi 0, %s698
                %p697 = scmp.ge.s32.totalorder %s696, %s689
                %s701 = sphi 0, %s708
                %s702 = sphi %s692, %s711
                %s703 = sphi %s694, %s712
              $region66: #{adapter_forward.1} parent=55 // loop_header_branch
                %700 = sbr.rel (%p697) target = $region70
              $region67: #{adapter_forward.1} parent=55 // loop_body
                %v704 = vld [vmem:[%s702] sm:$0xff]
                %705 = vst [vmem:[%s703] sm:$0xff] %v704
                %s706 = sadd.s32 1, %s701
                %p707 = scmp.ge.s32.totalorder %s706, %s689
                %s708 = scalar_select %p707, 0, %s706
                %s709 = smul.u32 %s708, 8
                %s710 = smul.u32 %s708, 8
                %s711 = scalar_lea.vmem %s692, %s709 [#allocation2]
                %s712 = scalar_lea.vmem %s694, %s710
              $region68: #{adapter_forward.1} parent=55 // loop_footer
                %s698 = sadd.s32 %s696, 1
              $region69: #{adapter_forward.1} parent=55 // loop_footer_branch
                %695 = sbr.rel target = $region65
              $region70: #{adapter_forward.1} parent=55 // loop_exit
                _
            $region56: #{adapter_forward.1} parent=47 // pred_fallthru
              _
          $region48: #{adapter_forward.1} parent=43 // pred_fallthru
            _
          %772 = vnop
        $region44: #{adapter_forward.1} parent=39 // pred_fallthru
          _
      $region40: #{adapter_forward.1} parent=5 // pred_fallthru
        _
      %p773 = scmp.le.s32.totalorder 2, %s11
      // Predicated region
      $region93: #{adapter_forward.1} parent=5 // pred_check
        %p774 = pneg %p773
      $region94: #{adapter_forward.1} parent=5 // pred_check_branch
        %776 = sbr.rel (%p774) target = $region96
      $region95: #{adapter_forward.1} parent=5 // pred_region
        %s777 = ssub.s32 %s11, 2
        // Predicated region
        $region97: #{adapter_forward.1} parent=95 // pred_check
          %p778 = pneg %p150
        $region98: #{adapter_forward.1} parent=95 // pred_check_branch
          %780 = sbr.rel (%p778) target = $region100
        $region99: #{adapter_forward.1} parent=95 // pred_region
          %s781 = sand.u32 %s135, 1
          %s782 = sand.u32 %s135, 1
          %s783 = smul.addr %s782, 48
          %s784 = scalar_lea.vmem [#allocation2], %s783
        $region100: #{adapter_forward.1} parent=95 // pred_fallthru
          _
      $region96: #{adapter_forward.1} parent=5 // pred_fallthru
        _
    $region6: #{adapter_forward.1} parent=1 // loop_footer
      %s15 = sadd.s32 1, %s11
    $region7: #{adapter_forward.1} parent=1 // loop_footer_branch
      %10 = sbr.rel target = $region3
    $region8: #{adapter_forward.1} parent=1 // loop_exit
      _

</llo_original>
